<compile_context>
chip_gen: v6e
topology: v6e:2x2x1
jax: 0.10.0
libtpu: 0.0.40
codegen_flags: <defaults>
</compile_context>

<pallas_src>
import functools

import numpy as np
import jax
import jax.numpy as jnp
from jax.experimental import pallas as pl
from jax.experimental.pallas import tpu as pltpu


BN_EPS = 1e-5
BN_SCALE = float(1.0 / np.sqrt(1.0 + BN_EPS))   # gamma=1, var=1, beta=0, mean=0

DOWN_TAPS = ((0, 0), (0, 1), (1, 0), (1, 1))    # (dh, dw) shifts on the parity grid
# ConvTranspose2d(k=4,s=2,p=1) sub-pixel taps per output parity:
#   parity 0 -> (input offset -1, kernel tap 3), (0, 1)
#   parity 1 -> (0, 2), (+1, 0)
UP_TAPS = {0: ((-1, 3), (0, 1)), 1: ((0, 2), (1, 0))}


def _apply_act(y, act):
    if act == "leaky":
        return jnp.where(y > 0, y, 0.2 * y)
    if act == "relu":
        return jnp.maximum(y, 0.0)
    if act == "tanh":
        return jnp.tanh(y)
    return y  # "none"


# ----------------------------------------------------------------------------
# Pallas kernel: for each output plane p accumulate, over (source, tap),
#   W[src][p, tap] (Co, C_s)  @  X[src][:, off : off + M] (C_s, M)
# then add the per-channel shift and apply the activation.  Everything is
# whole-array resident in VMEM (largest layer input ~0.5 MB bf16).
# ----------------------------------------------------------------------------
def _conv_kernel(*args, offsets, act):
    n_src = len(offsets[0])
    x_refs = args[:n_src]
    w_refs = args[n_src:2 * n_src]
    shift_ref = args[2 * n_src]
    out_ref = args[2 * n_src + 1]
    n_planes, n_out, m = out_ref.shape
    for p in range(n_planes):
        acc = jnp.zeros((n_out, m), jnp.float32)
        for s in range(n_src):
            for t, off in enumerate(offsets[p][s]):
                xs = x_refs[s][:, off:off + m]                    # static slice
                acc = acc + jnp.dot(w_refs[s][p, t], xs,
                                    preferred_element_type=jnp.float32)
        y = _apply_act(acc + shift_ref[...], act)
        out_ref[p] = y.astype(out_ref.dtype)


def _conv_call(x_exts, w_stacks, shift, offsets, act, out_dtype,
               n_planes, n_out, m):
    kernel = functools.partial(_conv_kernel, offsets=offsets, act=act)
    in_specs = ([pl.BlockSpec(x.shape, lambda i: (0, 0)) for x in x_exts]
                + [pl.BlockSpec(w.shape, lambda i: (0, 0, 0, 0)) for w in w_stacks]
                + [pl.BlockSpec(shift.shape, lambda i: (0, 0))])
    return pl.pallas_call(
        kernel,
        out_shape=jax.ShapeDtypeStruct((n_planes, n_out, m), out_dtype),
        grid=(1,),
        in_specs=in_specs,
        out_specs=pl.BlockSpec((n_planes, n_out, m), lambda i: (0, 0, 0)),
        compiler_params=pltpu.CompilerParams(dimension_semantics=("arbitrary",)),
    )(*x_exts, *w_stacks, shift)


# ----------------------------------------------------------------------------
# Layer wrappers (layout plumbing only).  Activations are (C, N, H, W) bf16.
# ----------------------------------------------------------------------------
def conv_down(x, layer, act, pad_mode, compute_dtype=jnp.bfloat16,
              out_dtype=jnp.bfloat16):
    """Conv2d(k=4, s=2, p=1).  x: (Ci, N, H, W); layer['w']: (1, 4, Co, 4*Ci)."""
    Ci, N, H, W = x.shape
    Ho, Wo = H // 2, W // 2
    Hp, Wp = Ho + 1, Wo + 1                                  # padded parity grid
    w = layer["w"].astype(compute_dtype)
    Co = w.shape[2]
    mode = "reflect" if pad_mode == "reflect" else "constant"
    xp = jnp.pad(x, ((0, 0), (0, 0), (1, 1), (1, 1)), mode=mode)
    # space-to-depth parity split: pure relayout, each element read/written once
    xpar = xp.reshape(Ci, N, Hp, 2, Wp, 2).transpose(3, 5, 0, 1, 2, 4)
    Mk = N * Hp * Wp
    x_ext = jnp.pad(xpar.reshape(4 * Ci, Mk), ((0, 0), (0, Wp + 2)))
    x_ext = x_ext.astype(compute_dtype)
    taps = tuple(dh * Wp + dw for (dh, dw) in DOWN_TAPS)
    offsets = ((taps,),)                                     # [plane][source][tap]
    out = _conv_call([x_ext], [w], layer["shift"], offsets, act,
                     out_dtype, 1, Co, Mk)
    return out.reshape(Co, N, Hp, Wp)[:, :, :Ho, :Wo]


def conv_up(xs, layer, act, compute_dtype=jnp.bfloat16, out_dtype=jnp.bfloat16):
    """ConvTranspose2d(k=4, s=2, p=1, bias folded).  xs: list of (C_s, N, H, W)
    sources (the channel-concat of the PyTorch model, never materialized);
    layer['ws'][s]: (4 phases, 4 taps, Co, C_s)."""
    _, N, H, W = xs[0].shape
    Hp, Wp = H + 2, W + 2                                    # zero-padded grid
    Mk = N * Hp * Wp
    lpad = Wp + 2
    x_exts = []
    for x in xs:
        xp = jnp.pad(x, ((0, 0), (0, 0), (1, 1), (1, 1)))
        xf = jnp.pad(xp.reshape(x.shape[0], Mk), ((0, 0), (lpad, Wp + 2)))
        x_exts.append(xf.astype(compute_dtype))
    ws = [w.astype(compute_dtype) for w in layer["ws"]]
    Co = ws[0].shape[2]
    offsets = []
    for ph in range(2):
        for pw in range(2):
            taps = tuple(lpad + dh * Wp + dw
                         for (dh, _) in UP_TAPS[ph] for (dw, _) in UP_TAPS[pw])
            offsets.append(tuple(taps for _ in xs))
    out = _conv_call(x_exts, ws, layer["shift"], tuple(offsets), act,
                     out_dtype, 4, Co, Mk)
    # crop the 1-pixel garbage ring and interleave the 4 sub-pixel phases
    out = out.reshape(2, 2, Co, N, Hp, Wp)[:, :, :, :, 1:H + 1, 1:W + 1]
    return out.transpose(2, 3, 4, 0, 5, 1).reshape(Co, N, 2 * H, 2 * W)


# ----------------------------------------------------------------------------
# One-time weight preparation (hoisted out of the forward)
# ----------------------------------------------------------------------------
def prep_down_weights(weight, scale, dtype=jnp.bfloat16):
    """weight: (Co, Ci, 4, 4) -> (1, 4 taps, Co, 4*Ci) parity-channel order."""
    Co, Ci = weight.shape[:2]
    taps = []
    for (dh, dw) in DOWN_TAPS:
        wt = weight[:, :, 2 * dh:2 * dh + 2, 2 * dw:2 * dw + 2]   # (Co, Ci, 2, 2)
        taps.append(jnp.transpose(wt, (0, 2, 3, 1)).reshape(Co, 4 * Ci) * scale)
    return jnp.stack(taps, axis=0)[None].astype(dtype)


def prep_up_weights(weight, ch_slices, scale, dtype=jnp.bfloat16):
    """weight: (Ci_total, Co, 4, 4) (PyTorch ConvTranspose layout).
    Returns one (4 phases, 4 taps, Co, C_s) array per source channel slice."""
    ws = []
    for (c0, c1) in ch_slices:
        wsrc = weight[c0:c1]
        planes = []
        for ph in range(2):
            for pw in range(2):
                taps = [jnp.transpose(wsrc[:, :, kh, kw]) * scale
                        for (_, kh) in UP_TAPS[ph] for (_, kw) in UP_TAPS[pw]]
                planes.append(jnp.stack(taps, axis=0))
        ws.append(jnp.stack(planes, axis=0).astype(dtype))
    return ws


def init_generator_params(key, in_channels=3, features=8):
    keys = iter(jax.random.split(key, 64))

    def conv_w(co, ci):
        return jax.random.normal(next(keys), (co, ci, 4, 4), jnp.float32) / np.sqrt(ci * 16.0)

    def convT_w(ci, co):
        return jax.random.normal(next(keys), (ci, co, 4, 4), jnp.float32) / np.sqrt(ci * 16.0)

    def bias(c):
        return 0.01 * jax.random.normal(next(keys), (c,), jnp.float32)

    f = features
    p = {}
    p["init_w"], p["init_b"] = conv_w(f, in_channels), bias(f)           # + LeakyReLU
    down_ch = [(f, 2 * f), (2 * f, 4 * f), (4 * f, 8 * f),
               (8 * f, 8 * f), (8 * f, 8 * f), (8 * f, 8 * f)]
    p["down"] = [(conv_w(co, ci), bias(co)) for ci, co in down_ch]       # + BN + LeakyReLU
    p["bott_w"], p["bott_b"] = conv_w(8 * f, 8 * f), bias(8 * f)         # + ReLU
    up_ch = [(8 * f, 8 * f), (16 * f, 8 * f), (16 * f, 8 * f), (16 * f, 8 * f),
             (16 * f, 4 * f), (8 * f, 2 * f), (4 * f, f)]
    p["up"] = [convT_w(ci, co) for ci, co in up_ch]                      # bias=False + BN + ReLU
    p["final_w"], p["final_b"] = convT_w(2 * f, in_channels), bias(in_channels)  # + Tanh
    return p


def prepare_params(raw):
    """BN(eval)/bias folding, sub-pixel weight slicing, bf16 casts -- done once.
    NOTE: a trained checkpoint with non-trivial BN stats only needs the scalar
    scale replaced by the per-channel gamma/sqrt(var+eps) vector (it multiplies
    the Co axis of every prepared weight) plus the matching per-channel shift."""
    def shift_vec(b, scale):
        return (b * scale).reshape(-1, 1).astype(jnp.float32)

    prep = {
        "init": {"w": prep_down_weights(raw["init_w"], 1.0),
                 "shift": shift_vec(raw["init_b"], 1.0)},
        "down": [{"w": prep_down_weights(w, BN_SCALE),
                  "shift": shift_vec(b, BN_SCALE)} for (w, b) in raw["down"]],
        "bott": {"w": prep_down_weights(raw["bott_w"], 1.0),
                 "shift": shift_vec(raw["bott_b"], 1.0)},
    }
    ups = []
    for i, w in enumerate(raw["up"]):
        ci_t, co = w.shape[0], w.shape[1]
        slices = [(0, ci_t)] if i == 0 else [(0, ci_t // 2), (ci_t // 2, ci_t)]
        ups.append({"ws": prep_up_weights(w, slices, BN_SCALE),
                    "shift": jnp.zeros((co, 1), jnp.float32)})
    prep["up"] = ups
    wf = raw["final_w"]
    cif = wf.shape[0]
    prep["final"] = {"ws": prep_up_weights(wf, [(0, cif // 2), (cif // 2, cif)], 1.0),
                     "shift": shift_vec(raw["final_b"], 1.0)}
    return prep


# ----------------------------------------------------------------------------
# Generator forward (mirrors PyTorch Generator.forward, eval mode)
# ----------------------------------------------------------------------------
def generator_forward(prep, x_nchw):
    x = jnp.transpose(x_nchw, (1, 0, 2, 3)).astype(jnp.bfloat16)   # (C, N, H, W)

    d1 = conv_down(x, prep["init"], act="leaky", pad_mode="reflect")
    downs = [d1]
    cur = d1
    for lyr in prep["down"]:                       # down1..down6: conv+BN+LeakyReLU
        cur = conv_down(cur, lyr, act="leaky", pad_mode="reflect")
        downs.append(cur)
    d1, d2, d3, d4, d5, d6, d7 = downs

    bott = conv_down(d7, prep["bott"], act="relu", pad_mode="zeros")

    up1 = conv_up([bott], prep["up"][0], act="relu")
    up2 = conv_up([up1, d7], prep["up"][1], act="relu")   # concat done in-kernel
    up3 = conv_up([up2, d6], prep["up"][2], act="relu")
    up4 = conv_up([up3, d5], prep["up"][3], act="relu")
    up5 = conv_up([up4, d4], prep["up"][4], act="relu")
    up6 = conv_up([up5, d3], prep["up"][5], act="relu")
    up7 = conv_up([up6, d2], prep["up"][6], act="relu")

    out = conv_up([up7, d1], prep["final"], act="tanh", out_dtype=jnp.float32)
    return jnp.transpose(out, (1, 0, 2, 3))        # back to NCHW


# ----------------------------------------------------------------------------
# Pure-XLA references (for self-checks)
# ----------------------------------------------------------------------------
def _ref_conv_down(x_nchw, w, b, pad_mode):
    x = x_nchw.astype(jnp.float32)
    if pad_mode == "reflect":
        x = jnp.pad(x, ((0, 0), (0, 0), (1, 1), (1, 1)), mode="reflect")
        pad = "VALID"
    else:
        pad = ((1, 1), (1, 1))
    y = jax.lax.conv_general_dilated(
        x, w.astype(jnp.float32), window_strides=(2, 2), padding=pad,
        dimension_numbers=("NCHW", "OIHW", "NCHW"))
    return y if b is None else y + b[None, :, None, None]


def _ref_conv_transpose(x_nchw, w, b):
    x = x_nchw.astype(jnp.float32)
    w_flip = jnp.transpose(w[:, :, ::-1, ::-1], (1, 0, 2, 3)).astype(jnp.float32)
    y = jax.lax.conv_general_dilated(
        x, w_flip, window_strides=(1, 1), padding=((2, 2), (2, 2)),
        lhs_dilation=(2, 2), dimension_numbers=("NCHW", "OIHW", "NCHW"))
    return y if b is None else y + b[None, :, None, None]


def _ref_generator(raw, x_nchw):
    lrelu = lambda v: jnp.where(v > 0, v, 0.2 * v)
    relu = lambda v: jnp.maximum(v, 0.0)
    d1 = lrelu(_ref_conv_down(x_nchw, raw["init_w"], raw["init_b"], "reflect"))
    downs = [d1]
    cur = d1
    for (w, b) in raw["down"]:
        cur = lrelu(BN_SCALE * _ref_conv_down(cur, w, b, "reflect"))
        downs.append(cur)
    d1, d2, d3, d4, d5, d6, d7 = downs
    bott = relu(_ref_conv_down(d7, raw["bott_w"], raw["bott_b"], "zeros"))
    up = lambda w, xin: relu(BN_SCALE * _ref_conv_transpose(xin, w, None))
    u1 = up(raw["up"][0], bott)
    u2 = up(raw["up"][1], jnp.concatenate([u1, d7], 1))
    u3 = up(raw["up"][2], jnp.concatenate([u2, d6], 1))
    u4 = up(raw["up"][3], jnp.concatenate([u3, d5], 1))
    u5 = up(raw["up"][4], jnp.concatenate([u4, d4], 1))
    u6 = up(raw["up"][5], jnp.concatenate([u5, d3], 1))
    u7 = up(raw["up"][6], jnp.concatenate([u6, d2], 1))
    return jnp.tanh(_ref_conv_transpose(jnp.concatenate([u7, d1], 1),
                                        raw["final_w"], raw["final_b"]))


if __name__ == "__main__":
    IN_CHANNELS, FEATURES = 3, 8
    key = jax.random.PRNGKey(0)
    kx, kp, kc = jax.random.split(key, 3)

    # --- per-lowering correctness checks (f32 compute, small shapes) ---
    kc1, kc2, kc3, kc4, kc5, kc6 = jax.random.split(kc, 6)
    xc = jax.random.normal(kc1, (8, 1, 16, 16), jnp.float32)          # (Ci, N, H, W)
    wc = jax.random.normal(kc2, (16, 8, 4, 4), jnp.float32) / 8.0
    bc = 0.1 * jax.random.normal(kc3, (16,), jnp.float32)
    lyr = {"w": prep_down_weights(wc, 1.0, dtype=jnp.float32),
           "shift": bc.reshape(-1, 1)}
    down_fn = jax.jit(functools.partial(conv_down, act="none", pad_mode="reflect",
                                        compute_dtype=jnp.float32,
                                        out_dtype=jnp.float32))
    got = jnp.transpose(down_fn(xc, lyr), (1, 0, 2, 3))
    ref = _ref_conv_down(jnp.transpose(xc, (1, 0, 2, 3)), wc, bc, "reflect")
    assert float(jnp.max(jnp.abs(got - ref))) < 5e-2, "conv_down mismatch"

    xa = jax.random.normal(kc4, (8, 1, 8, 8), jnp.float32)
    xb = jax.random.normal(kc5, (8, 1, 8, 8), jnp.float32)
    wt = jax.random.normal(kc6, (16, 12, 4, 4), jnp.float32) / 16.0
    lyr = {"ws": prep_up_weights(wt, [(0, 8), (8, 16)], 1.0, dtype=jnp.float32),
           "shift": jnp.zeros((12, 1), jnp.float32)}
    up_fn = jax.jit(functools.partial(conv_up, act="none",
                                      compute_dtype=jnp.float32,
                                      out_dtype=jnp.float32))
    got = jnp.transpose(up_fn([xa, xb], lyr), (1, 0, 2, 3))
    ref = _ref_conv_transpose(
        jnp.concatenate([jnp.transpose(xa, (1, 0, 2, 3)),
                         jnp.transpose(xb, (1, 0, 2, 3))], 1), wt, None)
    assert float(jnp.max(jnp.abs(got - ref))) < 5e-2, "conv_transpose mismatch"

    # --- full generator forward (8 stride-2 stages require 256x256 input) ---
    x = jax.random.normal(kx, (1, IN_CHANNELS, 256, 256), jnp.float32)
    raw = init_generator_params(kp, in_channels=IN_CHANNELS, features=FEATURES)
    prep = jax.jit(prepare_params)(raw)           # one-time weight prep (hoisted)

    fwd = jax.jit(generator_forward)
    y = jax.block_until_ready(fwd(prep, x))

    assert y.shape == (1, IN_CHANNELS, 256, 256), y.shape
    assert bool(jnp.all(jnp.isfinite(y)))
    # loose end-to-end check of the bf16 pipeline vs a pure-XLA f32 reference
    y_ref = jax.jit(_ref_generator)(raw, x)
    err = float(jnp.max(jnp.abs(y - y_ref)))
    assert err < 0.25, f"end-to-end mismatch: {err}"
    print("KERNEL_OK")
</pallas_src>

<mosaic_0001>
module attributes {stable_mosaic.version = 11 : i64} {
  func.func @_conv_kernel(%arg0: i32, %arg1: memref<32x92xf32, #tpu.memory_space<vmem>>, %arg2: memref<1x4x16x32xf32, #tpu.memory_space<vmem>>, %arg3: memref<16x1xf32, #tpu.memory_space<vmem>>, %arg4: memref<1x16x81xf32, #tpu.memory_space<vmem>>) attributes {dimension_semantics = [#tpu.dimension_semantics<arbitrary>], iteration_bounds = array<i64: 1>, scalar_prefetch = 0 : i64, scratch_operands = 0 : i64, tpu.core_type = #tpu.core_type<tc>, window_params = [{pipeline_mode = #tpu.pipeline_mode<synchronous>, transform_indices = @transform_0, window_bounds = array<i64: 32, 92>}, {pipeline_mode = #tpu.pipeline_mode<synchronous>, transform_indices = @transform_1, window_bounds = array<i64: 1, 4, 16, 32>}, {pipeline_mode = #tpu.pipeline_mode<synchronous>, transform_indices = @transform_2, window_bounds = array<i64: 16, 1>}, {pipeline_mode = #tpu.pipeline_mode<synchronous>, transform_indices = @transform_3, window_bounds = array<i64: 1, 16, 81>}]} {
    %cst = arith.constant 0.000000e+00 : f32
    %0 = vector.broadcast %cst : f32 to vector<16x81xf32>
    %c0 = arith.constant 0 : index
    %c0_0 = arith.constant 0 : index
    %1 = vector.load %arg1[%c0, %c0_0] : memref<32x92xf32, #tpu.memory_space<vmem>>, vector<32x81xf32>
    %c0_1 = arith.constant 0 : index
    %c0_2 = arith.constant 0 : index
    %c0_3 = arith.constant 0 : index
    %c0_4 = arith.constant 0 : index
    %2 = vector.load %arg2[%c0_1, %c0_2, %c0_3, %c0_4] : memref<1x4x16x32xf32, #tpu.memory_space<vmem>>, vector<1x1x16x32xf32>
    %3 = vector.shape_cast %2 : vector<1x1x16x32xf32> to vector<16x32xf32>
    %cst_5 = arith.constant dense<0.000000e+00> : vector<16x81xf32>
    %4 = tpu.matmul %3, %1, %cst_5 {dimension_numbers = #tpu.dot_dimension_numbers<[1], [0], [0], [1], [0, 0, 1, 1], [], []>} : vector<16x32xf32>, vector<32x81xf32>, vector<16x81xf32> -> vector<16x81xf32>
    %5 = arith.addf %0, %4 : vector<16x81xf32>
    %c0_6 = arith.constant 0 : index
    %c1 = arith.constant 1 : index
    %6 = vector.load %arg1[%c0_6, %c1] : memref<32x92xf32, #tpu.memory_space<vmem>>, vector<32x81xf32>
    %c0_7 = arith.constant 0 : index
    %c1_8 = arith.constant 1 : index
    %c0_9 = arith.constant 0 : index
    %c0_10 = arith.constant 0 : index
    %7 = vector.load %arg2[%c0_7, %c1_8, %c0_9, %c0_10] : memref<1x4x16x32xf32, #tpu.memory_space<vmem>>, vector<1x1x16x32xf32>
    %8 = vector.shape_cast %7 : vector<1x1x16x32xf32> to vector<16x32xf32>
    %cst_11 = arith.constant dense<0.000000e+00> : vector<16x81xf32>
    %9 = tpu.matmul %8, %6, %cst_11 {dimension_numbers = #tpu.dot_dimension_numbers<[1], [0], [0], [1], [0, 0, 1, 1], [], []>} : vector<16x32xf32>, vector<32x81xf32>, vector<16x81xf32> -> vector<16x81xf32>
    %10 = arith.addf %5, %9 : vector<16x81xf32>
    %c0_12 = arith.constant 0 : index
    %c9 = arith.constant 9 : index
    %11 = vector.load %arg1[%c0_12, %c9] : memref<32x92xf32, #tpu.memory_space<vmem>>, vector<32x81xf32>
    %c0_13 = arith.constant 0 : index
    %c2 = arith.constant 2 : index
    %c0_14 = arith.constant 0 : index
    %c0_15 = arith.constant 0 : index
    %12 = vector.load %arg2[%c0_13, %c2, %c0_14, %c0_15] : memref<1x4x16x32xf32, #tpu.memory_space<vmem>>, vector<1x1x16x32xf32>
    %13 = vector.shape_cast %12 : vector<1x1x16x32xf32> to vector<16x32xf32>
    %cst_16 = arith.constant dense<0.000000e+00> : vector<16x81xf32>
    %14 = tpu.matmul %13, %11, %cst_16 {dimension_numbers = #tpu.dot_dimension_numbers<[1], [0], [0], [1], [0, 0, 1, 1], [], []>} : vector<16x32xf32>, vector<32x81xf32>, vector<16x81xf32> -> vector<16x81xf32>
    %15 = arith.addf %10, %14 : vector<16x81xf32>
    %c0_17 = arith.constant 0 : index
    %c10 = arith.constant 10 : index
    %16 = vector.load %arg1[%c0_17, %c10] : memref<32x92xf32, #tpu.memory_space<vmem>>, vector<32x81xf32>
    %c0_18 = arith.constant 0 : index
    %c3 = arith.constant 3 : index
    %c0_19 = arith.constant 0 : index
    %c0_20 = arith.constant 0 : index
    %17 = vector.load %arg2[%c0_18, %c3, %c0_19, %c0_20] : memref<1x4x16x32xf32, #tpu.memory_space<vmem>>, vector<1x1x16x32xf32>
    %18 = vector.shape_cast %17 : vector<1x1x16x32xf32> to vector<16x32xf32>
    %cst_21 = arith.constant dense<0.000000e+00> : vector<16x81xf32>
    %19 = tpu.matmul %18, %16, %cst_21 {dimension_numbers = #tpu.dot_dimension_numbers<[1], [0], [0], [1], [0, 0, 1, 1], [], []>} : vector<16x32xf32>, vector<32x81xf32>, vector<16x81xf32> -> vector<16x81xf32>
    %20 = arith.addf %15, %19 : vector<16x81xf32>
    %c0_22 = arith.constant 0 : index
    %c0_23 = arith.constant 0 : index
    %21 = vector.load %arg3[%c0_22, %c0_23] : memref<16x1xf32, #tpu.memory_space<vmem>>, vector<16x1xf32>
    %22 = vector.broadcast %21 : vector<16x1xf32> to vector<16x81xf32>
    %23 = arith.addf %20, %22 : vector<16x81xf32>
    %c0_24 = arith.constant 0 : index
    %c0_25 = arith.constant 0 : index
    %c0_26 = arith.constant 0 : index
    %24 = vector.load %arg4[%c0_24, %c0_25, %c0_26] : memref<1x16x81xf32, #tpu.memory_space<vmem>>, vector<1x16x81xf32>
    %25 = vector.shape_cast %24 : vector<1x16x81xf32> to vector<16x81xf32>
    %26 = vector.shape_cast %23 : vector<16x81xf32> to vector<1x16x81xf32>
    tpu.vector_store %arg4[%c0_24, %c0_25, %c0_26], %26 {strides = array<i32>} : memref<1x16x81xf32, #tpu.memory_space<vmem>>, vector<1x16x81xf32>,
    return
  }
  func.func @transform_0(%arg0: i32) -> (i32, i32) {
    %c0_i32 = arith.constant 0 : i32
    %c0_i32_0 = arith.constant 0 : i32
    %c0_i32_1 = arith.constant 0 : i32
    return %c0_i32, %c0_i32_0 : i32, i32
  }
  func.func @transform_1(%arg0: i32) -> (i32, i32, i32, i32) {
    %c0_i32 = arith.constant 0 : i32
    %c0_i32_0 = arith.constant 0 : i32
    %c0_i32_1 = arith.constant 0 : i32
    %c0_i32_2 = arith.constant 0 : i32
    %c0_i32_3 = arith.constant 0 : i32
    return %c0_i32, %c0_i32_0, %c0_i32_1, %c0_i32_2 : i32, i32, i32, i32
  }
  func.func @transform_2(%arg0: i32) -> (i32, i32) {
    %c0_i32 = arith.constant 0 : i32
    %c0_i32_0 = arith.constant 0 : i32
    %c0_i32_1 = arith.constant 0 : i32
    return %c0_i32, %c0_i32_0 : i32, i32
  }
  func.func @transform_3(%arg0: i32) -> (i32, i32, i32) {
    %c0_i32 = arith.constant 0 : i32
    %c0_i32_0 = arith.constant 0 : i32
    %c0_i32_1 = arith.constant 0 : i32
    %c0_i32_2 = arith.constant 0 : i32
    return %c0_i32, %c0_i32_0, %c0_i32_1 : i32, i32, i32
  }
}

</mosaic_0001>

<llo_original>
// kernel: conv_down.1
$region0: #{conv_down.1}
  #allocation0 [shape = 'u32[]', space=smem, size = 0x4, offset = 0x4, fixed_abs, tag = 'smem constant byte address 0x4 - core index']
  #allocation1 [shape = 'u32[144,128]{1,0:T(1,128)}', space=vmem, size = 0x12000, scoped, tag = 'internal scratch']
  %s0 = inlined_call_operand.vmem [shape: f32[32,92], index: 0, kind: input, shape index: {}]
  %s1 = inlined_call_operand.vmem [shape: f32[1,4,16,32], index: 1, kind: input, shape index: {}]
  %s2 = inlined_call_operand.vmem [shape: f32[16,1], index: 2, kind: input, shape index: {}]
  %s3 = inlined_call_operand.vmem [shape: f32[1,16,81], index: 3, kind: output, shape index: {}]
  %s4 = sld [smem:[#allocation0]]
  $region22: #{conv_down.1} parent=0
    _
  %s6 = ssub.s32 1, %s4
  %s7 = scalar_select 0, %s6, %s4
  // Predicated region
  $region2: #{conv_down.1} parent=0 // pred_check
    _
  $region3: #{conv_down.1} parent=0 // pred_check_branch
    %9 = sbr.rel (0) target = $region5
  $region4: #{conv_down.1} parent=0 // pred_region
    _
  $region5: #{conv_down.1} parent=0 // pred_fallthru
    _
  // Predicated region
  $region6: #{conv_down.1} parent=0 // pred_check
    _
  $region7: #{conv_down.1} parent=0 // pred_check_branch
    %11 = sbr.rel (0) target = $region9
  $region8: #{conv_down.1} parent=0 // pred_region
    _
  $region9: #{conv_down.1} parent=0 // pred_fallthru
    _
  // Predicated region
  $region10: #{conv_down.1} parent=0 // pred_check
    _
  $region11: #{conv_down.1} parent=0 // pred_check_branch
    %13 = sbr.rel (0) target = $region13
  $region12: #{conv_down.1} parent=0 // pred_region
    _
  $region13: #{conv_down.1} parent=0 // pred_fallthru
    _
  %v14 = vld [vmem:[%s0] sm:$0xff]
  %v15 = vld [vmem:[%s0 + $0x8] sm:$0xff]
  %v16 = vld [vmem:[%s0 + $0x10] sm:$0xff]
  %v17 = vld [vmem:[%s0 + $0x18] sm:$0xff]
  %v18 = vld [vmem:[%s1] sm:$0xff]
  %v19 = vld [vmem:[%s1 + $0x8] sm:$0xff]
  %s20 = scalar_lea.vmem %s1, 16
  %v21 = vld [vmem:[%s20] sm:$0xff]
  %v22 = vld [vmem:[%s20 + $0x8] sm:$0xff]
  %27 = vrot.lane.b32.xlu0 %v14, 127
  %v28 = vpop.permute.xlu0 %27
  %29 = vrot.lane.b32.xlu0 %v15, 127
  %v30 = vpop.permute.xlu0 %29
  %31 = vrot.lane.b32.xlu0 %v16, 127
  %v32 = vpop.permute.xlu0 %31
  %33 = vrot.lane.b32.xlu0 %v17, 127
  %v34 = vpop.permute.xlu0 %33
  %vm39 = vcmask 261120
  %v41 = vsel %vm39, %v21, 0
  %v44 = vsel %vm39, %v22, 0
  %46 = vmatprep.subr.mxu0 0.0
  %47 = vmatpush1.msra.mxu0 0.0
  %48 = vmatprep.subr.mxu0 0.0
  %49 = vmatpush1.msra.mxu0 0.0
  %50 = vmatprep.subr.mxu0 0.0
  %51 = vmatpush1.msra.mxu0 0.0
  %52 = vmatprep.subr.mxu0 0.0
  %53 = vmatpush1.msra.mxu0 0.0
  %54 = vmatprep.subr.mxu0 0.0
  %55 = vmatpush1.msra.mxu0 0.0
  %56 = vmatprep.subr.mxu0 0.0
  %57 = vmatpush1.msra.mxu0 0.0
  %58 = vmatprep.subr.mxu0 0.0
  %59 = vmatpush1.msra.mxu0 0.0
  %60 = vmatprep.subr.mxu0 0.0
  %61 = vmatpush1.msra.mxu0 0.0
  %62 = vmatprep.subr.mxu0 0.0
  %63 = vmatpush1.msra.mxu0 0.0
  %64 = vmatprep.subr.mxu0 0.0
  %65 = vmatpush1.msra.mxu0 0.0
  %66 = vmatprep.subr.mxu0 0.0
  %67 = vmatpush1.msra.mxu0 0.0
  %68 = vmatprep.subr.mxu0 0.0
  %69 = vmatpush1.msra.mxu0 0.0
  %70 = vmatprep.subr.mxu0 0.0
  %71 = vmatpush1.msra.mxu0 %v34
  %72 = vmatprep.subr.mxu0 0.0
  %73 = vmatpush1.msra.mxu0 %v32
  %74 = vmatprep.subr.mxu0 0.0
  %75 = vmatpush1.msra.mxu0 %v30
  %76 = vmatprep.subr.mxu0 0.0
  %77 = vmatpush1.msra.mxu0 %v28
  %78 = vmatprep.subr.mxu0 0.0
  %79 = vmatpush2.msra.mxu0 0.0
  %80 = vmatprep.subr.mxu0 0.0
  %81 = vmatpush2.msra.mxu0 0.0
  %82 = vmatprep.subr.mxu0 0.0
  %83 = vmatpush2.msra.mxu0 0.0
  %84 = vmatprep.subr.mxu0 0.0
  %85 = vmatpush2.msra.mxu0 0.0
  %86 = vmatprep.subr.mxu0 0.0
  %87 = vmatpush2.msra.mxu0 0.0
  %88 = vmatprep.subr.mxu0 0.0
  %89 = vmatpush2.msra.mxu0 0.0
  %90 = vmatprep.subr.mxu0 0.0
  %91 = vmatpush2.msra.mxu0 0.0
  %92 = vmatprep.subr.mxu0 0.0
  %93 = vmatpush2.msra.mxu0 0.0
  %94 = vmatprep.subr.mxu0 0.0
  %95 = vmatpush2.msra.mxu0 0.0
  %96 = vmatprep.subr.mxu0 0.0
  %97 = vmatpush2.msra.mxu0 0.0
  %98 = vmatprep.subr.mxu0 0.0
  %99 = vmatpush2.msra.mxu0 0.0
  %100 = vmatprep.subr.mxu0 0.0
  %101 = vmatpush2.msra.mxu0 0.0
  %102 = vmatprep.subr.mxu0 0.0
  %103 = vmatpush2.msra.mxu0 0.0
  %104 = vmatprep.subr.mxu0 0.0
  %105 = vmatpush2.msra.mxu0 0.0
  %106 = vmatprep.subr.mxu0 0.0
  %107 = vmatpush2.msra.mxu0 0.0
  %108 = vmatprep.subr.mxu0 0.0
  %109 = vmatpush2.msra.mxu0 0.0
  %110 = vmatprep.mubr.f32.mxu0 0.0
  %111 = vmatmul.mubr.f32.gmra.mxu0 %v41
  %v112 = vpop.f32.mrf.mxu0
  %v113 = vadd.f32 0.0, %v112
  %v114 = vpop.f32.mrf.mxu0
  %115 = vmatprep.mubr.f32.mxu0 0.0
  %116 = vmatmul.mubr.f32.gmra.mxu0 %v44
  %v117 = vpop.f32.mrf.mxu0
  %v118 = vadd.f32 0.0, %v117
  %v119 = vpop.f32.mrf.mxu0
  %120 = vdwg.mxu0
  %v122 = vsel %vm39, %v18, 0
  %v125 = vsel %vm39, %v19, 0
  %127 = vmatprep.subr.mxu0 0.0
  %128 = vmatpush1.msra.mxu0 0.0
  %129 = vmatprep.subr.mxu0 0.0
  %130 = vmatpush1.msra.mxu0 0.0
  %131 = vmatprep.subr.mxu0 0.0
  %132 = vmatpush1.msra.mxu0 0.0
  %133 = vmatprep.subr.mxu0 0.0
  %134 = vmatpush1.msra.mxu0 0.0
  %135 = vmatprep.subr.mxu0 0.0
  %136 = vmatpush1.msra.mxu0 0.0
  %137 = vmatprep.subr.mxu0 0.0
  %138 = vmatpush1.msra.mxu0 0.0
  %139 = vmatprep.subr.mxu0 0.0
  %140 = vmatpush1.msra.mxu0 0.0
  %141 = vmatprep.subr.mxu0 0.0
  %142 = vmatpush1.msra.mxu0 0.0
  %143 = vmatprep.subr.mxu0 0.0
  %144 = vmatpush1.msra.mxu0 0.0
  %145 = vmatprep.subr.mxu0 0.0
  %146 = vmatpush1.msra.mxu0 0.0
  %147 = vmatprep.subr.mxu0 0.0
  %148 = vmatpush1.msra.mxu0 0.0
  %149 = vmatprep.subr.mxu0 0.0
  %150 = vmatpush1.msra.mxu0 0.0
  %151 = vmatprep.subr.mxu0 0.0
  %152 = vmatpush1.msra.mxu0 %v17
  %153 = vmatprep.subr.mxu0 0.0
  %154 = vmatpush1.msra.mxu0 %v16
  %155 = vmatprep.subr.mxu0 0.0
  %156 = vmatpush1.msra.mxu0 %v15
  %157 = vmatprep.subr.mxu0 0.0
  %158 = vmatpush1.msra.mxu0 %v14
  %159 = vmatprep.subr.mxu0 0.0
  %160 = vmatpush2.msra.mxu0 0.0
  %161 = vmatprep.subr.mxu0 0.0
  %162 = vmatpush2.msra.mxu0 0.0
  %163 = vmatprep.subr.mxu0 0.0
  %164 = vmatpush2.msra.mxu0 0.0
  %165 = vmatprep.subr.mxu0 0.0
  %166 = vmatpush2.msra.mxu0 0.0
  %167 = vmatprep.subr.mxu0 0.0
  %168 = vmatpush2.msra.mxu0 0.0
  %169 = vmatprep.subr.mxu0 0.0
  %170 = vmatpush2.msra.mxu0 0.0
  %171 = vmatprep.subr.mxu0 0.0
  %172 = vmatpush2.msra.mxu0 0.0
  %173 = vmatprep.subr.mxu0 0.0
  %174 = vmatpush2.msra.mxu0 0.0
  %175 = vmatprep.subr.mxu0 0.0
  %176 = vmatpush2.msra.mxu0 0.0
  %177 = vmatprep.subr.mxu0 0.0
  %178 = vmatpush2.msra.mxu0 0.0
  %179 = vmatprep.subr.mxu0 0.0
  %180 = vmatpush2.msra.mxu0 0.0
  %181 = vmatprep.subr.mxu0 0.0
  %182 = vmatpush2.msra.mxu0 0.0
  %183 = vmatprep.subr.mxu0 0.0
  %184 = vmatpush2.msra.mxu0 0.0
  %185 = vmatprep.subr.mxu0 0.0
  %186 = vmatpush2.msra.mxu0 0.0
  %187 = vmatprep.subr.mxu0 0.0
  %188 = vmatpush2.msra.mxu0 0.0
  %189 = vmatprep.subr.mxu0 0.0
  %190 = vmatpush2.msra.mxu0 0.0
  %191 = vmatprep.mubr.f32.mxu0 0.0
  %192 = vmatmul.mubr.f32.gmra.mxu0 %v122
  %v193 = vpop.f32.mrf.mxu0
  %v194 = vadd.f32 %v113, %v193
  %v195 = vpop.f32.mrf.mxu0
  %196 = vmatprep.mubr.f32.mxu0 0.0
  %197 = vmatmul.mubr.f32.gmra.mxu0 %v125
  %v198 = vpop.f32.mrf.mxu0
  %v199 = vadd.f32 %v118, %v198
  %v200 = vpop.f32.mrf.mxu0
  %201 = vdwg.mxu0
  %s202 = scalar_lea.vmem %s1, 32
  %v203 = vld [vmem:[%s202] sm:$0xff]
  %v204 = vld [vmem:[%s202 + $0x8] sm:$0xff]
  %205 = vrot.lane.b32.xlu0 %v14, 119
  %v206 = vpop.permute.xlu0 %205
  %207 = vrot.lane.b32.xlu0 %v15, 119
  %v208 = vpop.permute.xlu0 %207
  %209 = vrot.lane.b32.xlu0 %v16, 119
  %v210 = vpop.permute.xlu0 %209
  %211 = vrot.lane.b32.xlu0 %v17, 119
  %v212 = vpop.permute.xlu0 %211
  %v218 = vsel %vm39, %v203, 0
  %v221 = vsel %vm39, %v204, 0
  %223 = vmatprep.subr.mxu0 0.0
  %224 = vmatpush1.msra.mxu0 0.0
  %225 = vmatprep.subr.mxu0 0.0
  %226 = vmatpush1.msra.mxu0 0.0
  %227 = vmatprep.subr.mxu0 0.0
  %228 = vmatpush1.msra.mxu0 0.0
  %229 = vmatprep.subr.mxu0 0.0
  %230 = vmatpush1.msra.mxu0 0.0
  %231 = vmatprep.subr.mxu0 0.0
  %232 = vmatpush1.msra.mxu0 0.0
  %233 = vmatprep.subr.mxu0 0.0
  %234 = vmatpush1.msra.mxu0 0.0
  %235 = vmatprep.subr.mxu0 0.0
  %236 = vmatpush1.msra.mxu0 0.0
  %237 = vmatprep.subr.mxu0 0.0
  %238 = vmatpush1.msra.mxu0 0.0
  %239 = vmatprep.subr.mxu0 0.0
  %240 = vmatpush1.msra.mxu0 0.0
  %241 = vmatprep.subr.mxu0 0.0
  %242 = vmatpush1.msra.mxu0 0.0
  %243 = vmatprep.subr.mxu0 0.0
  %244 = vmatpush1.msra.mxu0 0.0
  %245 = vmatprep.subr.mxu0 0.0
  %246 = vmatpush1.msra.mxu0 0.0
  %247 = vmatprep.subr.mxu0 0.0
  %248 = vmatpush1.msra.mxu0 %v212
  %249 = vmatprep.subr.mxu0 0.0
  %250 = vmatpush1.msra.mxu0 %v210
  %251 = vmatprep.subr.mxu0 0.0
  %252 = vmatpush1.msra.mxu0 %v208
  %253 = vmatprep.subr.mxu0 0.0
  %254 = vmatpush1.msra.mxu0 %v206
  %255 = vmatprep.subr.mxu0 0.0
  %256 = vmatpush2.msra.mxu0 0.0
  %257 = vmatprep.subr.mxu0 0.0
  %258 = vmatpush2.msra.mxu0 0.0
  %259 = vmatprep.subr.mxu0 0.0
  %260 = vmatpush2.msra.mxu0 0.0
  %261 = vmatprep.subr.mxu0 0.0
  %262 = vmatpush2.msra.mxu0 0.0
  %263 = vmatprep.subr.mxu0 0.0
  %264 = vmatpush2.msra.mxu0 0.0
  %265 = vmatprep.subr.mxu0 0.0
  %266 = vmatpush2.msra.mxu0 0.0
  %267 = vmatprep.subr.mxu0 0.0
  %268 = vmatpush2.msra.mxu0 0.0
  %269 = vmatprep.subr.mxu0 0.0
  %270 = vmatpush2.msra.mxu0 0.0
  %271 = vmatprep.subr.mxu0 0.0
  %272 = vmatpush2.msra.mxu0 0.0
  %273 = vmatprep.subr.mxu0 0.0
  %274 = vmatpush2.msra.mxu0 0.0
  %275 = vmatprep.subr.mxu0 0.0
  %276 = vmatpush2.msra.mxu0 0.0
  %277 = vmatprep.subr.mxu0 0.0
  %278 = vmatpush2.msra.mxu0 0.0
  %279 = vmatprep.subr.mxu0 0.0
  %280 = vmatpush2.msra.mxu0 0.0
  %281 = vmatprep.subr.mxu0 0.0
  %282 = vmatpush2.msra.mxu0 0.0
  %283 = vmatprep.subr.mxu0 0.0
  %284 = vmatpush2.msra.mxu0 0.0
  %285 = vmatprep.subr.mxu0 0.0
  %286 = vmatpush2.msra.mxu0 0.0
  %287 = vmatprep.mubr.f32.mxu0 0.0
  %288 = vmatmul.mubr.f32.gmra.mxu0 %v218
  %v289 = vpop.f32.mrf.mxu0
  %v290 = vadd.f32 0.0, %v289
  %v291 = vpop.f32.mrf.mxu0
  %292 = vmatprep.mubr.f32.mxu0 0.0
  %293 = vmatmul.mubr.f32.gmra.mxu0 %v221
  %v294 = vpop.f32.mrf.mxu0
  %v295 = vadd.f32 0.0, %v294
  %v296 = vpop.f32.mrf.mxu0
  %297 = vdwg.mxu0
  %v298 = vadd.f32 %v194, %v290
  %v299 = vadd.f32 %v199, %v295
  %s300 = scalar_lea.vmem %s1, 48
  %v301 = vld [vmem:[%s300] sm:$0xff]
  %v302 = vld [vmem:[%s300 + $0x8] sm:$0xff]
  %303 = vrot.lane.b32.xlu0 %v14, 118
  %v304 = vpop.permute.xlu0 %303
  %305 = vrot.lane.b32.xlu0 %v15, 118
  %v306 = vpop.permute.xlu0 %305
  %307 = vrot.lane.b32.xlu0 %v16, 118
  %v308 = vpop.permute.xlu0 %307
  %309 = vrot.lane.b32.xlu0 %v17, 118
  %v310 = vpop.permute.xlu0 %309
  %v316 = vsel %vm39, %v301, 0
  %v319 = vsel %vm39, %v302, 0
  %321 = vmatprep.subr.mxu0 0.0
  %322 = vmatpush1.msra.mxu0 0.0
  %323 = vmatprep.subr.mxu0 0.0
  %324 = vmatpush1.msra.mxu0 0.0
  %325 = vmatprep.subr.mxu0 0.0
  %326 = vmatpush1.msra.mxu0 0.0
  %327 = vmatprep.subr.mxu0 0.0
  %328 = vmatpush1.msra.mxu0 0.0
  %329 = vmatprep.subr.mxu0 0.0
  %330 = vmatpush1.msra.mxu0 0.0
  %331 = vmatprep.subr.mxu0 0.0
  %332 = vmatpush1.msra.mxu0 0.0
  %333 = vmatprep.subr.mxu0 0.0
  %334 = vmatpush1.msra.mxu0 0.0
  %335 = vmatprep.subr.mxu0 0.0
  %336 = vmatpush1.msra.mxu0 0.0
  %337 = vmatprep.subr.mxu0 0.0
  %338 = vmatpush1.msra.mxu0 0.0
  %339 = vmatprep.subr.mxu0 0.0
  %340 = vmatpush1.msra.mxu0 0.0
  %341 = vmatprep.subr.mxu0 0.0
  %342 = vmatpush1.msra.mxu0 0.0
  %343 = vmatprep.subr.mxu0 0.0
  %344 = vmatpush1.msra.mxu0 0.0
  %345 = vmatprep.subr.mxu0 0.0
  %346 = vmatpush1.msra.mxu0 %v310
  %347 = vmatprep.subr.mxu0 0.0
  %348 = vmatpush1.msra.mxu0 %v308
  %349 = vmatprep.subr.mxu0 0.0
  %350 = vmatpush1.msra.mxu0 %v306
  %351 = vmatprep.subr.mxu0 0.0
  %352 = vmatpush1.msra.mxu0 %v304
  %353 = vmatprep.subr.mxu0 0.0
  %354 = vmatpush2.msra.mxu0 0.0
  %355 = vmatprep.subr.mxu0 0.0
  %356 = vmatpush2.msra.mxu0 0.0
  %357 = vmatprep.subr.mxu0 0.0
  %358 = vmatpush2.msra.mxu0 0.0
  %359 = vmatprep.subr.mxu0 0.0
  %360 = vmatpush2.msra.mxu0 0.0
  %361 = vmatprep.subr.mxu0 0.0
  %362 = vmatpush2.msra.mxu0 0.0
  %363 = vmatprep.subr.mxu0 0.0
  %364 = vmatpush2.msra.mxu0 0.0
  %365 = vmatprep.subr.mxu0 0.0
  %366 = vmatpush2.msra.mxu0 0.0
  %367 = vmatprep.subr.mxu0 0.0
  %368 = vmatpush2.msra.mxu0 0.0
  %369 = vmatprep.subr.mxu0 0.0
  %370 = vmatpush2.msra.mxu0 0.0
  %371 = vmatprep.subr.mxu0 0.0
  %372 = vmatpush2.msra.mxu0 0.0
  %373 = vmatprep.subr.mxu0 0.0
  %374 = vmatpush2.msra.mxu0 0.0
  %375 = vmatprep.subr.mxu0 0.0
  %376 = vmatpush2.msra.mxu0 0.0
  %377 = vmatprep.subr.mxu0 0.0
  %378 = vmatpush2.msra.mxu0 0.0
  %379 = vmatprep.subr.mxu0 0.0
  %380 = vmatpush2.msra.mxu0 0.0
  %381 = vmatprep.subr.mxu0 0.0
  %382 = vmatpush2.msra.mxu0 0.0
  %383 = vmatprep.subr.mxu0 0.0
  %384 = vmatpush2.msra.mxu0 0.0
  %385 = vmatprep.mubr.f32.mxu0 0.0
  %386 = vmatmul.mubr.f32.gmra.mxu0 %v316
  %v387 = vpop.f32.mrf.mxu0
  %v388 = vadd.f32 0.0, %v387
  %v389 = vpop.f32.mrf.mxu0
  %390 = vmatprep.mubr.f32.mxu0 0.0
  %391 = vmatmul.mubr.f32.gmra.mxu0 %v319
  %v392 = vpop.f32.mrf.mxu0
  %v393 = vadd.f32 0.0, %v392
  %v394 = vpop.f32.mrf.mxu0
  %395 = vdwg.mxu0
  %v396 = vadd.f32 %v298, %v388
  %v397 = vadd.f32 %v299, %v393
  %v398 = vld [vmem:[%s2] sm:$0xff]
  %v399 = vld [vmem:[%s2 + $0x8] sm:$0xff]
  %401 = vset.pattern.permute.xlu0 0
  %402 = vperm.xlu0 %401, %v398
  %v403 = vpop.permute.xlu0 %402
  %406 = vset.pattern.permute.xlu0 0
  %407 = vperm.xlu0 %406, %v399
  %v408 = vpop.permute.xlu0 %407
  %v410 = vadd.f32 %v396, %v403
  %v411 = vadd.f32 %v397, %v408
  %vm412 = vcmask 662528
  %413 = vst.msk [vmem:[%s3] sm:$0xff] %vm412, %v410
  %414 = vst.msk [vmem:[%s3 + $0x8] sm:$0xff] %vm412, %v411
  // Predicated region
  $region14: #{conv_down.1} parent=0 // pred_check
    _
  $region15: #{conv_down.1} parent=0 // pred_check_branch
    %416 = sbr.rel (0) target = $region17
  $region16: #{conv_down.1} parent=0 // pred_region
    _
  $region17: #{conv_down.1} parent=0 // pred_fallthru
    _
  // Predicated region
  $region18: #{conv_down.1} parent=0 // pred_check
    _
  $region19: #{conv_down.1} parent=0 // pred_check_branch
    %418 = sbr.rel (0) target = $region21
  $region20: #{conv_down.1} parent=0 // pred_region
    _
  $region21: #{conv_down.1} parent=0 // pred_fallthru
    _

</llo_original>
